<compile_context>
chip_gen: v7x
topology: tpu7x:2x2x1
jax: 0.10.0
libtpu: 0.0.40
codegen_flags: <defaults>
</compile_context>

<pallas_src>
import functools

import jax
import jax.numpy as jnp
from jax.experimental import pallas as pl
from jax.experimental.pallas import tpu as pltpu


def _round_up(x, m):
    return ((x + m - 1) // m) * m


def il_fusion_kernel(img_ref, pt_ref,
                     wpt_ref,     # (pc, ic+rc) bf16 : [w1 | wfc2] packed
                     wfc1_ref,    # (ic, rc)    bf16
                     fc3b_ref,    # (2, rc) f32 : row0 = wfc3^T, row1 = bfc1+bfc2
                     bfc3_ref,    # (1, 1)  f32
                     ss_ref,      # (2, ic) f32 : row0 = BN scale, row1 = BN shift (bias folded)
                     out_ref,
                     *, ic, rc):
    # Cast MXU operands to bf16 in-kernel (keeps HBM traffic at f32, halves MXU work).
    img = img_ref[...].astype(jnp.bfloat16)              # (tm, ic)
    pt = pt_ref[...].astype(jnp.bfloat16)                # (tm, pc)
    fc3b = fc3b_ref[...]                                  # (2, rc) f32
    ss = ss_ref[...]                                      # (2, ic) f32

    # Single fused MXU push for the point-feature path: columns [0:ic] are the
    # conv1 linear output (pre-BN), columns [ic:ic+rc] are fc2(point).
    pt_out = jnp.dot(pt, wpt_ref[...], preferred_element_type=jnp.float32)   # (tm, ic+rc) f32
    pn = pt_out[:, :ic]                                   # conv1 pre-BN
    rp = pt_out[:, ic:ic + rc]                            # fc2(point)

    # fc1(img) on the MXU (f32 accumulation).
    ri = jnp.dot(img, wfc1_ref[...], preferred_element_type=jnp.float32)     # (tm, rc) f32

    # attention gate: sigma = sigmoid(fc3(tanh(fc1(img) + fc2(point))))
    g = jnp.tanh(ri + rp + fc3b[1:2, :])                  # (tm, rc), bias = bfc1+bfc2 folded
    # fc3 has a 1-wide output -> VPU multiply + XLU lane reduce instead of the MXU.
    logit = jnp.sum(g * fc3b[0:1, :], axis=-1, keepdims=True) + bfc3_ref[...]
    sigma = jax.nn.sigmoid(logit)                         # (tm, 1) f32

    # conv1 = Linear(pc, ic) + BatchNorm1d(ic) + ReLU (BN + bias folded into scale/shift).
    pn = pn * ss[0:1, :] + ss[1:2, :]
    pn = jnp.maximum(pn, 0.0)

    out_ref[...] = (pn * sigma).astype(out_ref.dtype)


def il_fusion(img_feats, point_feats, params, *, tm=None):
    N, ic = img_feats.shape
    N2, pc = point_feats.shape
    assert N == N2
    rc = params["wfc1"].shape[1]

    # Adaptive row tile: single grid step for small N; for large point clouds the
    # cap is sized from a per-row double-buffered VMEM budget (~8 MiB of tiles).
    if tm is None:
        row_bytes = 4 * (ic + pc) * 2 + 4 * ic * 2 + 4 * (ic + 2 * rc)
        cap = max(256, min(2048, ((8 * 1024 * 1024) // row_bytes) // 8 * 8))
        tm = min(_round_up(N, 8), cap)
    Np = _round_up(N, tm)
    if Np != N:
        pad = Np - N
        img_feats = jnp.pad(img_feats, ((0, pad), (0, 0)))
        point_feats = jnp.pad(point_feats, ((0, pad), (0, 0)))

    img_f32 = img_feats.astype(jnp.float32)
    pt_f32 = point_feats.astype(jnp.float32)

    # Weights are tiny: pack / cast on the wrapper side.
    wpt = jnp.concatenate([params["w1"], params["wfc2"]], axis=1).astype(jnp.bfloat16)  # (pc, ic+rc)
    wfc1 = params["wfc1"].astype(jnp.bfloat16)                                          # (ic, rc)
    fc3b = jnp.concatenate([params["wfc3"].T,
                            params["bfc1"] + params["bfc2"]], axis=0)                   # (2, rc) f32
    ss = jnp.concatenate([params["scale"], params["shift"]], axis=0)                    # (2, ic) f32
    bfc3 = params["bfc3"]                                                               # (1, 1)  f32

    grid = (Np // tm,)

    cost = pl.CostEstimate(
        flops=int(2 * Np * (pc * (ic + rc) + ic * rc + rc)),
        transcendentals=int(Np * (rc + 1)),
        bytes_accessed=int(4 * Np * (ic + pc) + 4 * Np * ic
                           + 2 * (pc * (ic + rc) + ic * rc)
                           + 4 * (2 * rc + 2 * ic + 1)),
    )

    def full(shape):
        return pl.BlockSpec(shape, lambda i: (0, 0))

    out = pl.pallas_call(
        functools.partial(il_fusion_kernel, ic=ic, rc=rc),
        out_shape=jax.ShapeDtypeStruct((Np, ic), jnp.float32),
        grid_spec=pltpu.PrefetchScalarGridSpec(
            num_scalar_prefetch=0,
            grid=grid,
            in_specs=[
                pl.BlockSpec((tm, ic), lambda i: (i, 0)),   # img tile (f32)
                pl.BlockSpec((tm, pc), lambda i: (i, 0)),   # point tile (f32)
                full((pc, ic + rc)),                        # packed [w1 | wfc2]
                full((ic, rc)),                             # wfc1
                full((2, rc)),                              # [wfc3^T ; bfc1+bfc2]
                full((1, 1)),                               # bfc3
                full((2, ic)),                              # [BN scale ; BN shift]
            ],
            out_specs=pl.BlockSpec((tm, ic), lambda i: (i, 0)),
        ),
        compiler_params=pltpu.CompilerParams(
            dimension_semantics=("parallel",)),
        cost_estimate=cost,
    )(img_f32, pt_f32, wpt, wfc1, fc3b, bfc3, ss)

    return out[:N] if Np != N else out


def make_params(key, ic, pc):
    rc = ic // 4
    ks = jax.random.split(key, 12)
    u = lambda k, shape, bound: jax.random.uniform(k, shape, jnp.float32, -bound, bound)

    # nn.Linear-style init (uniform +- 1/sqrt(fan_in)), deterministic
    wfc1 = u(ks[0], (ic, rc), 1.0 / jnp.sqrt(ic))
    bfc1 = u(ks[1], (1, rc), 1.0 / jnp.sqrt(ic))
    wfc2 = u(ks[2], (pc, rc), 1.0 / jnp.sqrt(pc))
    bfc2 = u(ks[3], (1, rc), 1.0 / jnp.sqrt(pc))
    wfc3 = u(ks[4], (rc, 1), 1.0 / jnp.sqrt(rc))
    bfc3 = u(ks[5], (1, 1), 1.0 / jnp.sqrt(rc))
    w1 = u(ks[6], (pc, ic), 1.0 / jnp.sqrt(pc))
    b1 = u(ks[7], (1, ic), 1.0 / jnp.sqrt(pc))

    # BatchNorm1d params (inference-mode statistics), deterministic
    gamma = 1.0 + 0.1 * jax.random.normal(ks[8], (1, ic), jnp.float32)
    beta = 0.1 * jax.random.normal(ks[9], (1, ic), jnp.float32)
    running_mean = 0.1 * jax.random.normal(ks[10], (1, ic), jnp.float32)
    running_var = jnp.abs(jax.random.normal(ks[11], (1, ic), jnp.float32)) + 0.5
    eps = 1e-5

    s = gamma / jnp.sqrt(running_var + eps)
    scale = s
    shift = b1 * s + (beta - running_mean * s)   # folds Linear bias + BN shift

    return dict(wfc1=wfc1, bfc1=bfc1, wfc2=wfc2, bfc2=bfc2,
                wfc3=wfc3, bfc3=bfc3, w1=w1, scale=scale, shift=shift)


def reference_f32(img, pt, p):
    ri = img @ p["wfc1"] + p["bfc1"]
    rp = pt @ p["wfc2"] + p["bfc2"]
    sigma = jax.nn.sigmoid(jnp.tanh(ri + rp) @ p["wfc3"] + p["bfc3"])
    pn = (pt @ p["w1"]) * p["scale"] + p["shift"]
    pn = jnp.maximum(pn, 0.0)
    return pn * sigma


def reference_bf16(img, pt, p):
    # Same bf16-operand / f32-accumulate matmul scheme as the kernel.
    b = lambda x: x.astype(jnp.bfloat16)
    ri = jnp.dot(b(img), b(p["wfc1"]), preferred_element_type=jnp.float32)
    rp = jnp.dot(b(pt), b(p["wfc2"]), preferred_element_type=jnp.float32)
    g = jnp.tanh(ri + rp + (p["bfc1"] + p["bfc2"]))
    sigma = jax.nn.sigmoid(g @ p["wfc3"] + p["bfc3"])
    pn = jnp.dot(b(pt), b(p["w1"]), preferred_element_type=jnp.float32)
    pn = pn * p["scale"] + p["shift"]
    pn = jnp.maximum(pn, 0.0)
    return pn * sigma


if __name__ == "__main__":
    # channels = (ic, pc) — smallest entry of the documented lists
    ic, pc = 64, 96
    N = 256

    key = jax.random.PRNGKey(0)
    k_img, k_pt, k_params = jax.random.split(key, 3)
    img_feats = jax.random.normal(k_img, (N, ic), jnp.float32)
    point_feats = jax.random.normal(k_pt, (N, pc), jnp.float32)
    params = make_params(k_params, ic, pc)

    out = il_fusion(img_feats, point_feats, params)
    out = jax.block_until_ready(out)
    assert out.shape == (N, ic)

    # Tight check vs a reference using the same bf16-operand matmul scheme.
    ref_bf = reference_bf16(img_feats, point_feats, params)
    assert jnp.allclose(out, ref_bf, rtol=5e-3, atol=5e-3), "mismatch vs bf16-matched reference"

    # Loose sanity check vs the pure-f32 module semantics (bf16 matmul noise only).
    ref_f32 = reference_f32(img_feats, point_feats, params)
    assert float(jnp.max(jnp.abs(out - ref_f32))) < 0.1, "diverges from f32 module semantics"

    print("KERNEL_OK")
</pallas_src>

<mosaic_0001>
module attributes {stable_mosaic.version = 11 : i64} {
  func.func @il_fusion_kernel(%arg0: i32, %arg1: memref<256x64xf32, #tpu.memory_space<vmem>>, %arg2: memref<256x96xf32, #tpu.memory_space<vmem>>, %arg3: memref<96x80xbf16, #tpu.memory_space<vmem>>, %arg4: memref<64x16xbf16, #tpu.memory_space<vmem>>, %arg5: memref<2x16xf32, #tpu.memory_space<vmem>>, %arg6: memref<1x1xf32, #tpu.memory_space<vmem>>, %arg7: memref<2x64xf32, #tpu.memory_space<vmem>>, %arg8: memref<256x64xf32, #tpu.memory_space<vmem>>) attributes {dimension_semantics = [#tpu.dimension_semantics<parallel>], iteration_bounds = array<i64: 1>, scalar_prefetch = 0 : i64, scratch_operands = 0 : i64, tpu.core_type = #tpu.core_type<tc>, window_params = [{transform_indices = @transform_0, window_bounds = array<i64: 256, 64>}, {transform_indices = @transform_1, window_bounds = array<i64: 256, 96>}, {pipeline_mode = #tpu.pipeline_mode<synchronous>, transform_indices = @transform_2, window_bounds = array<i64: 96, 80>}, {pipeline_mode = #tpu.pipeline_mode<synchronous>, transform_indices = @transform_3, window_bounds = array<i64: 64, 16>}, {pipeline_mode = #tpu.pipeline_mode<synchronous>, transform_indices = @transform_4, window_bounds = array<i64: 2, 16>}, {pipeline_mode = #tpu.pipeline_mode<synchronous>, transform_indices = @transform_5, window_bounds = array<i64: 1, 1>}, {pipeline_mode = #tpu.pipeline_mode<synchronous>, transform_indices = @transform_6, window_bounds = array<i64: 2, 64>}, {transform_indices = @transform_7, window_bounds = array<i64: 256, 64>}]} {
    %c0 = arith.constant 0 : index
    %c0_0 = arith.constant 0 : index
    %0 = vector.load %arg1[%c0, %c0_0] : memref<256x64xf32, #tpu.memory_space<vmem>>, vector<256x64xf32>
    %1 = arith.truncf %0 : vector<256x64xf32> to vector<256x64xbf16>
    %c0_1 = arith.constant 0 : index
    %c0_2 = arith.constant 0 : index
    %2 = vector.load %arg2[%c0_1, %c0_2] : memref<256x96xf32, #tpu.memory_space<vmem>>, vector<256x96xf32>
    %3 = arith.truncf %2 : vector<256x96xf32> to vector<256x96xbf16>
    %c0_3 = arith.constant 0 : index
    %c0_4 = arith.constant 0 : index
    %4 = vector.load %arg5[%c0_3, %c0_4] : memref<2x16xf32, #tpu.memory_space<vmem>>, vector<2x16xf32>
    %c0_5 = arith.constant 0 : index
    %c0_6 = arith.constant 0 : index
    %5 = vector.load %arg7[%c0_5, %c0_6] : memref<2x64xf32, #tpu.memory_space<vmem>>, vector<2x64xf32>
    %c0_7 = arith.constant 0 : index
    %c0_8 = arith.constant 0 : index
    %6 = vector.load %arg3[%c0_7, %c0_8] : memref<96x80xbf16, #tpu.memory_space<vmem>>, vector<96x80xbf16>
    %cst = arith.constant dense<0.000000e+00> : vector<256x80xf32>
    %7 = tpu.matmul %3, %6, %cst {dimension_numbers = #tpu.dot_dimension_numbers<[1], [0], [0], [1], [0, 0, 1, 1], [], []>} : vector<256x96xbf16>, vector<96x80xbf16>, vector<256x80xf32> -> vector<256x80xf32>
    %8 = vector.extract_strided_slice %7 {offsets = [0, 0], sizes = [256, 64], strides = [1, 1]} : vector<256x80xf32> to vector<256x64xf32>
    %9 = vector.extract_strided_slice %7 {offsets = [0, 64], sizes = [256, 16], strides = [1, 1]} : vector<256x80xf32> to vector<256x16xf32>
    %c0_9 = arith.constant 0 : index
    %c0_10 = arith.constant 0 : index
    %10 = vector.load %arg4[%c0_9, %c0_10] : memref<64x16xbf16, #tpu.memory_space<vmem>>, vector<64x16xbf16>
    %cst_11 = arith.constant dense<0.000000e+00> : vector<256x16xf32>
    %11 = tpu.matmul %1, %10, %cst_11 {dimension_numbers = #tpu.dot_dimension_numbers<[1], [0], [0], [1], [0, 0, 1, 1], [], []>} : vector<256x64xbf16>, vector<64x16xbf16>, vector<256x16xf32> -> vector<256x16xf32>
    %12 = arith.addf %11, %9 : vector<256x16xf32>
    %13 = vector.extract_strided_slice %4 {offsets = [1, 0], sizes = [1, 16], strides = [1, 1]} : vector<2x16xf32> to vector<1x16xf32>
    %14 = vector.broadcast %13 : vector<1x16xf32> to vector<256x16xf32>
    %15 = arith.addf %12, %14 : vector<256x16xf32>
    %16 = math.tanh %15 : vector<256x16xf32>
    %17 = vector.extract_strided_slice %4 {offsets = [0, 0], sizes = [1, 16], strides = [1, 1]} : vector<2x16xf32> to vector<1x16xf32>
    %18 = vector.broadcast %17 : vector<1x16xf32> to vector<256x16xf32>
    %19 = arith.mulf %16, %18 : vector<256x16xf32>
    %cst_12 = arith.constant dense<0.000000e+00> : vector<256xf32>
    %20 = vector.multi_reduction <add>, %19, %cst_12 [1] : vector<256x16xf32> to vector<256xf32>
    %21 = vector.shape_cast %20 : vector<256xf32> to vector<256x1xf32>
    %c0_13 = arith.constant 0 : index
    %c0_14 = arith.constant 0 : index
    %22 = vector.load %arg6[%c0_13, %c0_14] : memref<1x1xf32, #tpu.memory_space<vmem>>, vector<1x1xf32>
    %23 = vector.broadcast %22 : vector<1x1xf32> to vector<256x1xf32>
    %24 = arith.addf %21, %23 : vector<256x1xf32>
    %25 = arith.negf %24 : vector<256x1xf32>
    %26 = math.exp %25 : vector<256x1xf32>
    %cst_15 = arith.constant 1.000000e+00 : f32
    %27 = vector.broadcast %cst_15 : f32 to vector<256x1xf32>
    %28 = arith.addf %27, %26 : vector<256x1xf32>
    %29 = arith.divf %27, %28 : vector<256x1xf32>
    %30 = vector.extract_strided_slice %5 {offsets = [0, 0], sizes = [1, 64], strides = [1, 1]} : vector<2x64xf32> to vector<1x64xf32>
    %31 = vector.broadcast %30 : vector<1x64xf32> to vector<256x64xf32>
    %32 = arith.mulf %8, %31 : vector<256x64xf32>
    %33 = vector.extract_strided_slice %5 {offsets = [1, 0], sizes = [1, 64], strides = [1, 1]} : vector<2x64xf32> to vector<1x64xf32>
    %34 = vector.broadcast %33 : vector<1x64xf32> to vector<256x64xf32>
    %35 = arith.addf %32, %34 : vector<256x64xf32>
    %cst_16 = arith.constant 0.000000e+00 : f32
    %36 = vector.broadcast %cst_16 : f32 to vector<256x64xf32>
    %37 = arith.maximumf %35, %36 : vector<256x64xf32>
    %38 = vector.broadcast %29 : vector<256x1xf32> to vector<256x64xf32>
    %39 = arith.mulf %37, %38 : vector<256x64xf32>
    %c0_17 = arith.constant 0 : index
    %c0_18 = arith.constant 0 : index
    %40 = vector.load %arg8[%c0_17, %c0_18] : memref<256x64xf32, #tpu.memory_space<vmem>>, vector<256x64xf32>
    tpu.vector_store %arg8[%c0_17, %c0_18], %39 {strides = array<i32>} : memref<256x64xf32, #tpu.memory_space<vmem>>, vector<256x64xf32>,
    return
  }
  func.func @transform_0(%arg0: i32) -> (i32, i32) {
    %c0_i32 = arith.constant 0 : i32
    %c0_i32_0 = arith.constant 0 : i32
    return %arg0, %c0_i32 : i32, i32
  }
  func.func @transform_1(%arg0: i32) -> (i32, i32) {
    %c0_i32 = arith.constant 0 : i32
    %c0_i32_0 = arith.constant 0 : i32
    return %arg0, %c0_i32 : i32, i32
  }
  func.func @transform_2(%arg0: i32) -> (i32, i32) {
    %c0_i32 = arith.constant 0 : i32
    %c0_i32_0 = arith.constant 0 : i32
    %c0_i32_1 = arith.constant 0 : i32
    return %c0_i32, %c0_i32_0 : i32, i32
  }
  func.func @transform_3(%arg0: i32) -> (i32, i32) {
    %c0_i32 = arith.constant 0 : i32
    %c0_i32_0 = arith.constant 0 : i32
    %c0_i32_1 = arith.constant 0 : i32
    return %c0_i32, %c0_i32_0 : i32, i32
  }
  func.func @transform_4(%arg0: i32) -> (i32, i32) {
    %c0_i32 = arith.constant 0 : i32
    %c0_i32_0 = arith.constant 0 : i32
    %c0_i32_1 = arith.constant 0 : i32
    return %c0_i32, %c0_i32_0 : i32, i32
  }
  func.func @transform_5(%arg0: i32) -> (i32, i32) {
    %c0_i32 = arith.constant 0 : i32
    %c0_i32_0 = arith.constant 0 : i32
    %c0_i32_1 = arith.constant 0 : i32
    return %c0_i32, %c0_i32_0 : i32, i32
  }
  func.func @transform_6(%arg0: i32) -> (i32, i32) {
    %c0_i32 = arith.constant 0 : i32
    %c0_i32_0 = arith.constant 0 : i32
    %c0_i32_1 = arith.constant 0 : i32
    return %c0_i32, %c0_i32_0 : i32, i32
  }
  func.func @transform_7(%arg0: i32) -> (i32, i32) {
    %c0_i32 = arith.constant 0 : i32
    %c0_i32_0 = arith.constant 0 : i32
    return %arg0, %c0_i32 : i32, i32
  }
}

</mosaic_0001>

<llo_original>
// kernel: tpu_custom_call.1
$region0: #{tpu_custom_call.1}
  #allocation0 [shape = 'u32[]', space=smem, size = 0x4, offset = 0x4, fixed_abs, tag = 'smem constant byte address 0x4 - core index']
  #allocation1 [shape = 'u32[144,128]{1,0:T(1,128)}', space=vmem, size = 0x12000, scoped, tag = 'internal scratch']
  #allocation2 [shape = 'f32[1,1]{1,0:T(1,128)S(1)}', space=vmem, size = 0x200, scoped, tag = 'scoped memory for tpu_custom_call.1']
  %s0 = inlined_call_operand.vmem [shape: f32[256,64], index: 0, kind: input, shape index: {}]
  %s1 = inlined_call_operand.vmem [shape: f32[256,96], index: 1, kind: input, shape index: {}]
  %s2 = inlined_call_operand.vmem [shape: bf16[96,80], index: 2, kind: input, shape index: {}]
  %s3 = inlined_call_operand.vmem [shape: bf16[64,16], index: 3, kind: input, shape index: {}]
  %s4 = inlined_call_operand.vmem [shape: f32[2,16], index: 4, kind: input, shape index: {}]
  %s5 = inlined_call_operand.<no memory space> [shape: f32[1,1], index: 5, kind: input, shape index: {}]
  %s6 = inlined_call_operand.vmem [shape: f32[2,64], index: 6, kind: input, shape index: {}]
  %s7 = inlined_call_operand.vmem [shape: f32[256,64], index: 7, kind: output, shape index: {}]
  %s8 = sld [smem:[#allocation0]]
  $region38: #{tpu_custom_call.1} parent=0
    _
  %s10 = ssub.s32 1, %s8
  %s11 = scalar_select 0, %s10, %s8
  %v12 = vstv %s5
  %13 = vst [vmem:[#allocation2] sm:$0x1] %v12
  // Predicated region
  $region2: #{tpu_custom_call.1} parent=0 // pred_check
    _
  $region3: #{tpu_custom_call.1} parent=0 // pred_check_branch
    %15 = sbr.rel (0) target = $region5
  $region4: #{tpu_custom_call.1} parent=0 // pred_region
    _
  $region5: #{tpu_custom_call.1} parent=0 // pred_fallthru
    _
  // Predicated region
  $region6: #{tpu_custom_call.1} parent=0 // pred_check
    _
  $region7: #{tpu_custom_call.1} parent=0 // pred_check_branch
    %17 = sbr.rel (0) target = $region9
  $region8: #{tpu_custom_call.1} parent=0 // pred_region
    _
  $region9: #{tpu_custom_call.1} parent=0 // pred_fallthru
    _
  // Predicated region
  $region10: #{tpu_custom_call.1} parent=0 // pred_check
    _
  $region11: #{tpu_custom_call.1} parent=0 // pred_check_branch
    %19 = sbr.rel (0) target = $region13
  $region12: #{tpu_custom_call.1} parent=0 // pred_region
    _
  $region13: #{tpu_custom_call.1} parent=0 // pred_fallthru
    _
  // Predicated region
  $region14: #{tpu_custom_call.1} parent=0 // pred_check
    _
  $region15: #{tpu_custom_call.1} parent=0 // pred_check_branch
    %21 = sbr.rel (0) target = $region17
  $region16: #{tpu_custom_call.1} parent=0 // pred_region
    _
  $region17: #{tpu_custom_call.1} parent=0 // pred_fallthru
    _
  // Predicated region
  $region18: #{tpu_custom_call.1} parent=0 // pred_check
    _
  $region19: #{tpu_custom_call.1} parent=0 // pred_check_branch
    %23 = sbr.rel (0) target = $region21
  $region20: #{tpu_custom_call.1} parent=0 // pred_region
    _
  $region21: #{tpu_custom_call.1} parent=0 // pred_fallthru
    _
  // Predicated region
  $region22: #{tpu_custom_call.1} parent=0 // pred_check
    _
  $region23: #{tpu_custom_call.1} parent=0 // pred_check_branch
    %25 = sbr.rel (0) target = $region25
  $region24: #{tpu_custom_call.1} parent=0 // pred_region
    _
  $region25: #{tpu_custom_call.1} parent=0 // pred_fallthru
    _
  // Predicated region
  $region26: #{tpu_custom_call.1} parent=0 // pred_check
    _
  $region27: #{tpu_custom_call.1} parent=0 // pred_check_branch
    %27 = sbr.rel (0) target = $region29
  $region28: #{tpu_custom_call.1} parent=0 // pred_region
    _
  $region29: #{tpu_custom_call.1} parent=0 // pred_fallthru
    _
  %v29 = vld [vmem:[%s0] sm:$0xff]
  %v30 = vld [vmem:[%s0 + $0x8] sm:$0xff]
  %v31 = vld [vmem:[%s0 + $0x10] sm:$0xff]
  %v32 = vld [vmem:[%s0 + $0x18] sm:$0xff]
  %v33 = vld [vmem:[%s0 + $0x20] sm:$0xff]
  %v34 = vld [vmem:[%s0 + $0x28] sm:$0xff]
  %v35 = vld [vmem:[%s0 + $0x30] sm:$0xff]
  %v36 = vld [vmem:[%s0 + $0x38] sm:$0xff]
  %v37 = vld [vmem:[%s0 + $0x40] sm:$0xff]
  %v38 = vld [vmem:[%s0 + $0x48] sm:$0xff]
  %v39 = vld [vmem:[%s0 + $0x50] sm:$0xff]
  %v40 = vld [vmem:[%s0 + $0x58] sm:$0xff]
  %v41 = vld [vmem:[%s0 + $0x60] sm:$0xff]
  %v42 = vld [vmem:[%s0 + $0x68] sm:$0xff]
  %v43 = vld [vmem:[%s0 + $0x70] sm:$0xff]
  %v44 = vld [vmem:[%s0 + $0x78] sm:$0xff]
  %v45 = vld [vmem:[%s0 + $0x80] sm:$0xff]
  %v46 = vld [vmem:[%s0 + $0x88] sm:$0xff]
  %v47 = vld [vmem:[%s0 + $0x90] sm:$0xff]
  %v48 = vld [vmem:[%s0 + $0x98] sm:$0xff]
  %v49 = vld [vmem:[%s0 + $0xa0] sm:$0xff]
  %v50 = vld [vmem:[%s0 + $0xa8] sm:$0xff]
  %v51 = vld [vmem:[%s0 + $0xb0] sm:$0xff]
  %v52 = vld [vmem:[%s0 + $0xb8] sm:$0xff]
  %v53 = vld [vmem:[%s0 + $0xc0] sm:$0xff]
  %v54 = vld [vmem:[%s0 + $0xc8] sm:$0xff]
  %v55 = vld [vmem:[%s0 + $0xd0] sm:$0xff]
  %v56 = vld [vmem:[%s0 + $0xd8] sm:$0xff]
  %v57 = vld [vmem:[%s0 + $0xe0] sm:$0xff]
  %v58 = vld [vmem:[%s0 + $0xe8] sm:$0xff]
  %v59 = vld [vmem:[%s0 + $0xf0] sm:$0xff]
  %v60 = vld [vmem:[%s0 + $0xf8] sm:$0xff]
  %v61 = vpack.c.bf16 %v30, %v29
  %v62 = vpack.c.bf16 %v32, %v31
  %v63 = vpack.c.bf16 %v34, %v33
  %v64 = vpack.c.bf16 %v36, %v35
  %v65 = vpack.c.bf16 %v38, %v37
  %v66 = vpack.c.bf16 %v40, %v39
  %v67 = vpack.c.bf16 %v42, %v41
  %v68 = vpack.c.bf16 %v44, %v43
  %v69 = vpack.c.bf16 %v46, %v45
  %v70 = vpack.c.bf16 %v48, %v47
  %v71 = vpack.c.bf16 %v50, %v49
  %v72 = vpack.c.bf16 %v52, %v51
  %v73 = vpack.c.bf16 %v54, %v53
  %v74 = vpack.c.bf16 %v56, %v55
  %v75 = vpack.c.bf16 %v58, %v57
  %v76 = vpack.c.bf16 %v60, %v59
  %v77 = vld [vmem:[%s1] sm:$0xff]
  %v78 = vld [vmem:[%s1 + $0x8] sm:$0xff]
  %v79 = vld [vmem:[%s1 + $0x10] sm:$0xff]
  %v80 = vld [vmem:[%s1 + $0x18] sm:$0xff]
  %v81 = vld [vmem:[%s1 + $0x20] sm:$0xff]
  %v82 = vld [vmem:[%s1 + $0x28] sm:$0xff]
  %v83 = vld [vmem:[%s1 + $0x30] sm:$0xff]
  %v84 = vld [vmem:[%s1 + $0x38] sm:$0xff]
  %v85 = vld [vmem:[%s1 + $0x40] sm:$0xff]
  %v86 = vld [vmem:[%s1 + $0x48] sm:$0xff]
  %v87 = vld [vmem:[%s1 + $0x50] sm:$0xff]
  %v88 = vld [vmem:[%s1 + $0x58] sm:$0xff]
  %v89 = vld [vmem:[%s1 + $0x60] sm:$0xff]
  %v90 = vld [vmem:[%s1 + $0x68] sm:$0xff]
  %v91 = vld [vmem:[%s1 + $0x70] sm:$0xff]
  %v92 = vld [vmem:[%s1 + $0x78] sm:$0xff]
  %v93 = vld [vmem:[%s1 + $0x80] sm:$0xff]
  %v94 = vld [vmem:[%s1 + $0x88] sm:$0xff]
  %v95 = vld [vmem:[%s1 + $0x90] sm:$0xff]
  %v96 = vld [vmem:[%s1 + $0x98] sm:$0xff]
  %v97 = vld [vmem:[%s1 + $0xa0] sm:$0xff]
  %v98 = vld [vmem:[%s1 + $0xa8] sm:$0xff]
  %v99 = vld [vmem:[%s1 + $0xb0] sm:$0xff]
  %v100 = vld [vmem:[%s1 + $0xb8] sm:$0xff]
  %v101 = vld [vmem:[%s1 + $0xc0] sm:$0xff]
  %v102 = vld [vmem:[%s1 + $0xc8] sm:$0xff]
  %v103 = vld [vmem:[%s1 + $0xd0] sm:$0xff]
  %v104 = vld [vmem:[%s1 + $0xd8] sm:$0xff]
  %v105 = vld [vmem:[%s1 + $0xe0] sm:$0xff]
  %v106 = vld [vmem:[%s1 + $0xe8] sm:$0xff]
  %v107 = vld [vmem:[%s1 + $0xf0] sm:$0xff]
  %v108 = vld [vmem:[%s1 + $0xf8] sm:$0xff]
  %v109 = vpack.c.bf16 %v78, %v77
  %v110 = vpack.c.bf16 %v80, %v79
  %v111 = vpack.c.bf16 %v82, %v81
  %v112 = vpack.c.bf16 %v84, %v83
  %v113 = vpack.c.bf16 %v86, %v85
  %v114 = vpack.c.bf16 %v88, %v87
  %v115 = vpack.c.bf16 %v90, %v89
  %v116 = vpack.c.bf16 %v92, %v91
  %v117 = vpack.c.bf16 %v94, %v93
  %v118 = vpack.c.bf16 %v96, %v95
  %v119 = vpack.c.bf16 %v98, %v97
  %v120 = vpack.c.bf16 %v100, %v99
  %v121 = vpack.c.bf16 %v102, %v101
  %v122 = vpack.c.bf16 %v104, %v103
  %v123 = vpack.c.bf16 %v106, %v105
  %v124 = vpack.c.bf16 %v108, %v107
  %v125 = vld [vmem:[%s4] sm:$0x3]
  %v126 = vld [vmem:[%s6] sm:$0x3]
  %v127 = vld [vmem:[%s2] sm:$0xf]
  %v128 = vld [vmem:[%s2 + $0x4] sm:$0xf]
  %v129 = vld [vmem:[%s2 + $0x8] sm:$0xf]
  %v130 = vld [vmem:[%s2 + $0xc] sm:$0xf]
  %v131 = vld [vmem:[%s2 + $0x10] sm:$0xf]
  %v132 = vld [vmem:[%s2 + $0x14] sm:$0xf]
  %v133 = vld [vmem:[%s2 + $0x18] sm:$0xf]
  %v134 = vld [vmem:[%s2 + $0x1c] sm:$0xf]
  %v135 = vld [vmem:[%s2 + $0x20] sm:$0xf]
  %v136 = vld [vmem:[%s2 + $0x24] sm:$0xf]
  %v137 = vld [vmem:[%s2 + $0x28] sm:$0xf]
  %v138 = vld [vmem:[%s2 + $0x2c] sm:$0xf]
  %v151 = vunpack.c.l.b16 %v127
  %v152 = vunpack.c.l.b16 %v128
  %v153 = vunpack.c.l.b16 %v129
  %v154 = vunpack.c.l.b16 %v130
  %v155 = vunpack.c.l.b16 %v131
  %v156 = vunpack.c.l.b16 %v132
  %v157 = vunpack.c.l.b16 %v133
  %v158 = vunpack.c.l.b16 %v134
  %v159 = vunpack.c.l.b16 %v135
  %v160 = vunpack.c.l.b16 %v136
  %v161 = vunpack.c.l.b16 %v137
  %v162 = vunpack.c.l.b16 %v138
  %v163 = vpack.c.b16 %v152, %v151
  %v164 = vpack.c.b16 %v154, %v153
  %v165 = vpack.c.b16 %v156, %v155
  %v166 = vpack.c.b16 %v158, %v157
  %v167 = vpack.c.b16 %v160, %v159
  %v168 = vpack.c.b16 %v162, %v161
  %vm175 = vcmask 785408
  %v177 = vsel %vm175, %v109, 0
  %v180 = vsel %vm175, %v110, 0
  %v183 = vsel %vm175, %v111, 0
  %v186 = vsel %vm175, %v112, 0
  %v189 = vsel %vm175, %v113, 0
  %v192 = vsel %vm175, %v114, 0
  %v195 = vsel %vm175, %v115, 0
  %v198 = vsel %vm175, %v116, 0
  %v201 = vsel %vm175, %v117, 0
  %v204 = vsel %vm175, %v118, 0
  %v207 = vsel %vm175, %v119, 0
  %v210 = vsel %vm175, %v120, 0
  %v213 = vsel %vm175, %v121, 0
  %v216 = vsel %vm175, %v122, 0
  %v219 = vsel %vm175, %v123, 0
  %v222 = vsel %vm175, %v124, 0
  %224 = vmatprep.subr.bf16.mxu0 0
  %225 = vmatpush1.bf16.msra.mxu0 %v163
  %226 = vmatprep.subr.bf16.mxu0 0
  %227 = vmatpush1.bf16.msra.mxu0 %v164
  %228 = vmatprep.subr.bf16.mxu0 0
  %229 = vmatpush1.bf16.msra.mxu0 %v165
  %230 = vmatprep.subr.bf16.mxu0 0
  %231 = vmatpush1.bf16.msra.mxu0 %v166
  %232 = vmatprep.subr.bf16.mxu0 0
  %233 = vmatpush1.bf16.msra.mxu0 %v167
  %234 = vmatprep.subr.bf16.mxu0 0
  %235 = vmatpush1.bf16.msra.mxu0 %v168
  %236 = vmatprep.subr.bf16.mxu0 0
  %237 = vmatpush1.bf16.msra.mxu0 0
  %238 = vmatprep.subr.bf16.mxu0 0
  %239 = vmatpush1.bf16.msra.mxu0 0
  %240 = vmatprep.subr.bf16.mxu0 0
  %241 = vmatpush1.bf16.msra.mxu0 0
  %242 = vmatprep.subr.bf16.mxu0 0
  %243 = vmatpush1.bf16.msra.mxu0 0
  %244 = vmatprep.subr.bf16.mxu0 0
  %245 = vmatpush1.bf16.msra.mxu0 0
  %246 = vmatprep.subr.bf16.mxu0 0
  %247 = vmatpush1.bf16.msra.mxu0 0
  %248 = vmatprep.subr.bf16.mxu0 0
  %249 = vmatpush1.bf16.msra.mxu0 0
  %250 = vmatprep.subr.bf16.mxu0 0
  %251 = vmatpush1.bf16.msra.mxu0 0
  %252 = vmatprep.subr.bf16.mxu0 0
  %253 = vmatpush1.bf16.msra.mxu0 0
  %254 = vmatprep.subr.bf16.mxu0 0
  %255 = vmatpush1.bf16.msra.mxu0 0
  %256 = vmatprep.mubr.bf16.mxu0 0
  %257 = vmatmul.mubr.bf16.gmra.mrb[0].mxu0 %v177
  %v258 = vpop.f32.mrb[0].mxu0
  %v259 = vadd.f32 0.0, %v258
  %v260 = vpop.f32.mrb[0].mxu0
  %v261 = vpop.f32.mrb[0].mxu0
  %v262 = vadd.f32 0.0, %v261
  %v263 = vpop.f32.mrb[0].mxu0
  %264 = vmatprep.mubr.bf16.mxu0 0
  %265 = vmatmul.mubr.bf16.gmra.mrb[0].mxu0 %v180
  %v266 = vpop.f32.mrb[0].mxu0
  %v267 = vadd.f32 0.0, %v266
  %v268 = vpop.f32.mrb[0].mxu0
  %v269 = vpop.f32.mrb[0].mxu0
  %v270 = vadd.f32 0.0, %v269
  %v271 = vpop.f32.mrb[0].mxu0
  %272 = vmatprep.mubr.bf16.mxu0 0
  %273 = vmatmul.mubr.bf16.gmra.mrb[0].mxu0 %v183
  %v274 = vpop.f32.mrb[0].mxu0
  %v275 = vadd.f32 0.0, %v274
  %v276 = vpop.f32.mrb[0].mxu0
  %v277 = vpop.f32.mrb[0].mxu0
  %v278 = vadd.f32 0.0, %v277
  %v279 = vpop.f32.mrb[0].mxu0
  %280 = vmatprep.mubr.bf16.mxu0 0
  %281 = vmatmul.mubr.bf16.gmra.mrb[0].mxu0 %v186
  %v282 = vpop.f32.mrb[0].mxu0
  %v283 = vadd.f32 0.0, %v282
  %v284 = vpop.f32.mrb[0].mxu0
  %v285 = vpop.f32.mrb[0].mxu0
  %v286 = vadd.f32 0.0, %v285
  %v287 = vpop.f32.mrb[0].mxu0
  %288 = vmatprep.mubr.bf16.mxu0 0
  %289 = vmatmul.mubr.bf16.gmra.mrb[0].mxu0 %v189
  %v290 = vpop.f32.mrb[0].mxu0
  %v291 = vadd.f32 0.0, %v290
  %v292 = vpop.f32.mrb[0].mxu0
  %v293 = vpop.f32.mrb[0].mxu0
  %v294 = vadd.f32 0.0, %v293
  %v295 = vpop.f32.mrb[0].mxu0
  %296 = vmatprep.mubr.bf16.mxu0 0
  %297 = vmatmul.mubr.bf16.gmra.mrb[0].mxu0 %v192
  %v298 = vpop.f32.mrb[0].mxu0
  %v299 = vadd.f32 0.0, %v298
  %v300 = vpop.f32.mrb[0].mxu0
  %v301 = vpop.f32.mrb[0].mxu0
  %v302 = vadd.f32 0.0, %v301
  %v303 = vpop.f32.mrb[0].mxu0
  %304 = vmatprep.mubr.bf16.mxu0 0
  %305 = vmatmul.mubr.bf16.gmra.mrb[0].mxu0 %v195
  %v306 = vpop.f32.mrb[0].mxu0
  %v307 = vadd.f32 0.0, %v306
  %v308 = vpop.f32.mrb[0].mxu0
  %v309 = vpop.f32.mrb[0].mxu0
  %v310 = vadd.f32 0.0, %v309
  %v311 = vpop.f32.mrb[0].mxu0
  %312 = vmatprep.mubr.bf16.mxu0 0
  %313 = vmatmul.mubr.bf16.gmra.mrb[0].mxu0 %v198
  %v314 = vpop.f32.mrb[0].mxu0
  %v315 = vadd.f32 0.0, %v314
  %v316 = vpop.f32.mrb[0].mxu0
  %v317 = vpop.f32.mrb[0].mxu0
  %v318 = vadd.f32 0.0, %v317
  %v319 = vpop.f32.mrb[0].mxu0
  %320 = vmatprep.mubr.bf16.mxu0 0
  %321 = vmatmul.mubr.bf16.gmra.mrb[0].mxu0 %v201
  %v322 = vpop.f32.mrb[0].mxu0
  %v323 = vadd.f32 0.0, %v322
  %v324 = vpop.f32.mrb[0].mxu0
  %v325 = vpop.f32.mrb[0].mxu0
  %v326 = vadd.f32 0.0, %v325
  %v327 = vpop.f32.mrb[0].mxu0
  %328 = vmatprep.mubr.bf16.mxu0 0
  %329 = vmatmul.mubr.bf16.gmra.mrb[0].mxu0 %v204
  %v330 = vpop.f32.mrb[0].mxu0
  %v331 = vadd.f32 0.0, %v330
  %v332 = vpop.f32.mrb[0].mxu0
  %v333 = vpop.f32.mrb[0].mxu0
  %v334 = vadd.f32 0.0, %v333
  %v335 = vpop.f32.mrb[0].mxu0
  %336 = vmatprep.mubr.bf16.mxu0 0
  %337 = vmatmul.mubr.bf16.gmra.mrb[0].mxu0 %v207
  %v338 = vpop.f32.mrb[0].mxu0
  %v339 = vadd.f32 0.0, %v338
  %v340 = vpop.f32.mrb[0].mxu0
  %v341 = vpop.f32.mrb[0].mxu0
  %v342 = vadd.f32 0.0, %v341
  %v343 = vpop.f32.mrb[0].mxu0
  %344 = vmatprep.mubr.bf16.mxu0 0
  %345 = vmatmul.mubr.bf16.gmra.mrb[0].mxu0 %v210
  %v346 = vpop.f32.mrb[0].mxu0
  %v347 = vadd.f32 0.0, %v346
  %v348 = vpop.f32.mrb[0].mxu0
  %v349 = vpop.f32.mrb[0].mxu0
  %v350 = vadd.f32 0.0, %v349
  %v351 = vpop.f32.mrb[0].mxu0
  %352 = vmatprep.mubr.bf16.mxu0 0
  %353 = vmatmul.mubr.bf16.gmra.mrb[0].mxu0 %v213
  %v354 = vpop.f32.mrb[0].mxu0
  %v355 = vadd.f32 0.0, %v354
  %v356 = vpop.f32.mrb[0].mxu0
  %v357 = vpop.f32.mrb[0].mxu0
  %v358 = vadd.f32 0.0, %v357
  %v359 = vpop.f32.mrb[0].mxu0
  %360 = vmatprep.mubr.bf16.mxu0 0
  %361 = vmatmul.mubr.bf16.gmra.mrb[0].mxu0 %v216
  %v362 = vpop.f32.mrb[0].mxu0
  %v363 = vadd.f32 0.0, %v362
  %v364 = vpop.f32.mrb[0].mxu0
  %v365 = vpop.f32.mrb[0].mxu0
  %v366 = vadd.f32 0.0, %v365
  %v367 = vpop.f32.mrb[0].mxu0
  %368 = vmatprep.mubr.bf16.mxu0 0
  %369 = vmatmul.mubr.bf16.gmra.mrb[0].mxu0 %v219
  %v370 = vpop.f32.mrb[0].mxu0
  %v371 = vadd.f32 0.0, %v370
  %v372 = vpop.f32.mrb[0].mxu0
  %v373 = vpop.f32.mrb[0].mxu0
  %v374 = vadd.f32 0.0, %v373
  %v375 = vpop.f32.mrb[0].mxu0
  %376 = vmatprep.mubr.bf16.mxu0 0
  %377 = vmatmul.mubr.bf16.gmra.mrb[0].mxu0 %v222
  %v378 = vpop.f32.mrb[0].mxu0
  %v379 = vadd.f32 0.0, %v378
  %v380 = vpop.f32.mrb[0].mxu0
  %v381 = vpop.f32.mrb[0].mxu0
  %v382 = vadd.f32 0.0, %v381
  %v383 = vpop.f32.mrb[0].mxu0
  %384 = vdwg.mxu0
  %v385 = vld [vmem:[%s3] sm:$0xf]
  %v386 = vld [vmem:[%s3 + $0x4] sm:$0xf]
  %v387 = vld [vmem:[%s3 + $0x8] sm:$0xf]
  %v388 = vld [vmem:[%s3 + $0xc] sm:$0xf]
  %v389 = vld [vmem:[%s3 + $0x10] sm:$0xf]
  %v390 = vld [vmem:[%s3 + $0x14] sm:$0xf]
  %v391 = vld [vmem:[%s3 + $0x18] sm:$0xf]
  %v392 = vld [vmem:[%s3 + $0x1c] sm:$0xf]
  %v401 = vunpack.c.l.b16 %v385
  %v402 = vunpack.c.l.b16 %v386
  %v403 = vunpack.c.l.b16 %v387
  %v404 = vunpack.c.l.b16 %v388
  %v405 = vunpack.c.l.b16 %v389
  %v406 = vunpack.c.l.b16 %v390
  %v407 = vunpack.c.l.b16 %v391
  %v408 = vunpack.c.l.b16 %v392
  %v409 = vpack.c.b16 %v402, %v401
  %v410 = vpack.c.b16 %v404, %v403
  %v411 = vpack.c.b16 %v406, %v405
  %v412 = vpack.c.b16 %v408, %v407
  %449 = vrot.lane.b32.xlu0 %v259, 64
  %v450 = vpop.permute.xlu0 %449
  %451 = vrot.lane.b32.xlu0 %v262, 64
  %v452 = vpop.permute.xlu0 %451
  %453 = vrot.lane.b32.xlu0 %v267, 64
  %v454 = vpop.permute.xlu0 %453
  %455 = vrot.lane.b32.xlu0 %v270, 64
  %v456 = vpop.permute.xlu0 %455
  %457 = vrot.lane.b32.xlu0 %v275, 64
  %v458 = vpop.permute.xlu0 %457
  %459 = vrot.lane.b32.xlu0 %v278, 64
  %v460 = vpop.permute.xlu0 %459
  %461 = vrot.lane.b32.xlu0 %v283, 64
  %v462 = vpop.permute.xlu0 %461
  %463 = vrot.lane.b32.xlu0 %v286, 64
  %v464 = vpop.permute.xlu0 %463
  %465 = vrot.lane.b32.xlu0 %v291, 64
  %v466 = vpop.permute.xlu0 %465
  %467 = vrot.lane.b32.xlu0 %v294, 64
  %v468 = vpop.permute.xlu0 %467
  %469 = vrot.lane.b32.xlu0 %v299, 64
  %v470 = vpop.permute.xlu0 %469
  %471 = vrot.lane.b32.xlu0 %v302, 64
  %v472 = vpop.permute.xlu0 %471
  %473 = vrot.lane.b32.xlu0 %v307, 64
  %v474 = vpop.permute.xlu0 %473
  %475 = vrot.lane.b32.xlu0 %v310, 64
  %v476 = vpop.permute.xlu0 %475
  %477 = vrot.lane.b32.xlu0 %v315, 64
  %v478 = vpop.permute.xlu0 %477
  %479 = vrot.lane.b32.xlu0 %v318, 64
  %v480 = vpop.permute.xlu0 %479
  %481 = vrot.lane.b32.xlu0 %v323, 64
  %v482 = vpop.permute.xlu0 %481
  %483 = vrot.lane.b32.xlu0 %v326, 64
  %v484 = vpop.permute.xlu0 %483
  %485 = vrot.lane.b32.xlu0 %v331, 64
  %v486 = vpop.permute.xlu0 %485
  %487 = vrot.lane.b32.xlu0 %v334, 64
  %v488 = vpop.permute.xlu0 %487
  %489 = vrot.lane.b32.xlu0 %v339, 64
  %v490 = vpop.permute.xlu0 %489
  %491 = vrot.lane.b32.xlu0 %v342, 64
  %v492 = vpop.permute.xlu0 %491
  %493 = vrot.lane.b32.xlu0 %v347, 64
  %v494 = vpop.permute.xlu0 %493
  %495 = vrot.lane.b32.xlu0 %v350, 64
  %v496 = vpop.permute.xlu0 %495
  %497 = vrot.lane.b32.xlu0 %v355, 64
  %v498 = vpop.permute.xlu0 %497
  %499 = vrot.lane.b32.xlu0 %v358, 64
  %v500 = vpop.permute.xlu0 %499
  %501 = vrot.lane.b32.xlu0 %v363, 64
  %v502 = vpop.permute.xlu0 %501
  %503 = vrot.lane.b32.xlu0 %v366, 64
  %v504 = vpop.permute.xlu0 %503
  %505 = vrot.lane.b32.xlu0 %v371, 64
  %v506 = vpop.permute.xlu0 %505
  %507 = vrot.lane.b32.xlu0 %v374, 64
  %v508 = vpop.permute.xlu0 %507
  %509 = vrot.lane.b32.xlu0 %v379, 64
  %v510 = vpop.permute.xlu0 %509
  %511 = vrot.lane.b32.xlu0 %v382, 64
  %v512 = vpop.permute.xlu0 %511
  %vm545 = vcmask 523264
  %v547 = vsel %vm545, %v61, 0
  %v550 = vsel %vm545, %v62, 0
  %v553 = vsel %vm545, %v63, 0
  %v556 = vsel %vm545, %v64, 0
  %v559 = vsel %vm545, %v65, 0
  %v562 = vsel %vm545, %v66, 0
  %v565 = vsel %vm545, %v67, 0
  %v568 = vsel %vm545, %v68, 0
  %v571 = vsel %vm545, %v69, 0
  %v574 = vsel %vm545, %v70, 0
  %v577 = vsel %vm545, %v71, 0
  %v580 = vsel %vm545, %v72, 0
  %v583 = vsel %vm545, %v73, 0
  %v586 = vsel %vm545, %v74, 0
  %v589 = vsel %vm545, %v75, 0
  %v592 = vsel %vm545, %v76, 0
  %594 = vmatprep.subr.bf16.mxu0 0
  %595 = vmatpush1.bf16.msra.mxu0 %v409
  %596 = vmatprep.subr.bf16.mxu0 0
  %597 = vmatpush1.bf16.msra.mxu0 %v410
  %598 = vmatprep.subr.bf16.mxu0 0
  %599 = vmatpush1.bf16.msra.mxu0 %v411
  %600 = vmatprep.subr.bf16.mxu0 0
  %601 = vmatpush1.bf16.msra.mxu0 %v412
  %602 = vmatprep.subr.bf16.mxu0 0
  %603 = vmatpush1.bf16.msra.mxu0 0
  %604 = vmatprep.subr.bf16.mxu0 0
  %605 = vmatpush1.bf16.msra.mxu0 0
  %606 = vmatprep.subr.bf16.mxu0 0
  %607 = vmatpush1.bf16.msra.mxu0 0
  %608 = vmatprep.subr.bf16.mxu0 0
  %609 = vmatpush1.bf16.msra.mxu0 0
  %610 = vmatprep.subr.bf16.mxu0 0
  %611 = vmatpush1.bf16.msra.mxu0 0
  %612 = vmatprep.subr.bf16.mxu0 0
  %613 = vmatpush1.bf16.msra.mxu0 0
  %614 = vmatprep.subr.bf16.mxu0 0
  %615 = vmatpush1.bf16.msra.mxu0 0
  %616 = vmatprep.subr.bf16.mxu0 0
  %617 = vmatpush1.bf16.msra.mxu0 0
  %618 = vmatprep.subr.bf16.mxu0 0
  %619 = vmatpush1.bf16.msra.mxu0 0
  %620 = vmatprep.subr.bf16.mxu0 0
  %621 = vmatpush1.bf16.msra.mxu0 0
  %622 = vmatprep.subr.bf16.mxu0 0
  %623 = vmatpush1.bf16.msra.mxu0 0
  %624 = vmatprep.subr.bf16.mxu0 0
  %625 = vmatpush1.bf16.msra.mxu0 0
  %626 = vmatprep.mubr.bf16.mxu0 0
  %627 = vmatmul.mubr.bf16.gmra.mrb[0].mxu0 %v547
  %v628 = vpop.f32.mrb[0].mxu0
  %v629 = vadd.f32 %v450, %v628
  %v630 = vpop.f32.mrb[0].mxu0
  %v631 = vpop.f32.mrb[0].mxu0
  %v632 = vadd.f32 %v452, %v631
  %v633 = vpop.f32.mrb[0].mxu0
  %634 = vmatprep.mubr.bf16.mxu0 0
  %635 = vmatmul.mubr.bf16.gmra.mrb[0].mxu0 %v550
  %v636 = vpop.f32.mrb[0].mxu0
  %v637 = vadd.f32 %v454, %v636
  %v638 = vpop.f32.mrb[0].mxu0
  %v639 = vpop.f32.mrb[0].mxu0
  %v640 = vadd.f32 %v456, %v639
  %v641 = vpop.f32.mrb[0].mxu0
  %642 = vmatprep.mubr.bf16.mxu0 0
  %643 = vmatmul.mubr.bf16.gmra.mrb[0].mxu0 %v553
  %v644 = vpop.f32.mrb[0].mxu0
  %v645 = vadd.f32 %v458, %v644
  %v646 = vpop.f32.mrb[0].mxu0
  %v647 = vpop.f32.mrb[0].mxu0
  %v648 = vadd.f32 %v460, %v647
  %v649 = vpop.f32.mrb[0].mxu0
  %650 = vmatprep.mubr.bf16.mxu0 0
  %651 = vmatmul.mubr.bf16.gmra.mrb[0].mxu0 %v556
  %v652 = vpop.f32.mrb[0].mxu0
  %v653 = vadd.f32 %v462, %v652
  %v654 = vpop.f32.mrb[0].mxu0
  %v655 = vpop.f32.mrb[0].mxu0
  %v656 = vadd.f32 %v464, %v655
  %v657 = vpop.f32.mrb[0].mxu0
  %658 = vmatprep.mubr.bf16.mxu0 0
  %659 = vmatmul.mubr.bf16.gmra.mrb[0].mxu0 %v559
  %v660 = vpop.f32.mrb[0].mxu0
  %v661 = vadd.f32 %v466, %v660
  %v662 = vpop.f32.mrb[0].mxu0
  %v663 = vpop.f32.mrb[0].mxu0
  %v664 = vadd.f32 %v468, %v663
  %v665 = vpop.f32.mrb[0].mxu0
  %666 = vmatprep.mubr.bf16.mxu0 0
  %667 = vmatmul.mubr.bf16.gmra.mrb[0].mxu0 %v562
  %v668 = vpop.f32.mrb[0].mxu0
  %v669 = vadd.f32 %v470, %v668
  %v670 = vpop.f32.mrb[0].mxu0
  %v671 = vpop.f32.mrb[0].mxu0
  %v672 = vadd.f32 %v472, %v671
  %v673 = vpop.f32.mrb[0].mxu0
  %674 = vmatprep.mubr.bf16.mxu0 0
  %675 = vmatmul.mubr.bf16.gmra.mrb[0].mxu0 %v565
  %v676 = vpop.f32.mrb[0].mxu0
  %v677 = vadd.f32 %v474, %v676
  %v678 = vpop.f32.mrb[0].mxu0
  %v679 = vpop.f32.mrb[0].mxu0
  %v680 = vadd.f32 %v476, %v679
  %v681 = vpop.f32.mrb[0].mxu0
  %682 = vmatprep.mubr.bf16.mxu0 0
  %683 = vmatmul.mubr.bf16.gmra.mrb[0].mxu0 %v568
  %v684 = vpop.f32.mrb[0].mxu0
  %v685 = vadd.f32 %v478, %v684
  %v686 = vpop.f32.mrb[0].mxu0
  %v687 = vpop.f32.mrb[0].mxu0
  %v688 = vadd.f32 %v480, %v687
  %v689 = vpop.f32.mrb[0].mxu0
  %690 = vmatprep.mubr.bf16.mxu0 0
  %691 = vmatmul.mubr.bf16.gmra.mrb[0].mxu0 %v571
  %v692 = vpop.f32.mrb[0].mxu0
  %v693 = vadd.f32 %v482, %v692
  %v694 = vpop.f32.mrb[0].mxu0
  %v695 = vpop.f32.mrb[0].mxu0
  %v696 = vadd.f32 %v484, %v695
  %v697 = vpop.f32.mrb[0].mxu0
  %698 = vmatprep.mubr.bf16.mxu0 0
  %699 = vmatmul.mubr.bf16.gmra.mrb[0].mxu0 %v574
  %v700 = vpop.f32.mrb[0].mxu0
  %v701 = vadd.f32 %v486, %v700
  %v702 = vpop.f32.mrb[0].mxu0
  %v703 = vpop.f32.mrb[0].mxu0
  %v704 = vadd.f32 %v488, %v703
  %v705 = vpop.f32.mrb[0].mxu0
  %706 = vmatprep.mubr.bf16.mxu0 0
  %707 = vmatmul.mubr.bf16.gmra.mrb[0].mxu0 %v577
  %v708 = vpop.f32.mrb[0].mxu0
  %v709 = vadd.f32 %v490, %v708
  %v710 = vpop.f32.mrb[0].mxu0
  %v711 = vpop.f32.mrb[0].mxu0
  %v712 = vadd.f32 %v492, %v711
  %v713 = vpop.f32.mrb[0].mxu0
  %714 = vmatprep.mubr.bf16.mxu0 0
  %715 = vmatmul.mubr.bf16.gmra.mrb[0].mxu0 %v580
  %v716 = vpop.f32.mrb[0].mxu0
  %v717 = vadd.f32 %v494, %v716
  %v718 = vpop.f32.mrb[0].mxu0
  %v719 = vpop.f32.mrb[0].mxu0
  %v720 = vadd.f32 %v496, %v719
  %v721 = vpop.f32.mrb[0].mxu0
  %722 = vmatprep.mubr.bf16.mxu0 0
  %723 = vmatmul.mubr.bf16.gmra.mrb[0].mxu0 %v583
  %v724 = vpop.f32.mrb[0].mxu0
  %v725 = vadd.f32 %v498, %v724
  %v726 = vpop.f32.mrb[0].mxu0
  %v727 = vpop.f32.mrb[0].mxu0
  %v728 = vadd.f32 %v500, %v727
  %v729 = vpop.f32.mrb[0].mxu0
  %730 = vmatprep.mubr.bf16.mxu0 0
  %731 = vmatmul.mubr.bf16.gmra.mrb[0].mxu0 %v586
  %v732 = vpop.f32.mrb[0].mxu0
  %v733 = vadd.f32 %v502, %v732
  %v734 = vpop.f32.mrb[0].mxu0
  %v735 = vpop.f32.mrb[0].mxu0
  %v736 = vadd.f32 %v504, %v735
  %v737 = vpop.f32.mrb[0].mxu0
  %738 = vmatprep.mubr.bf16.mxu0 0
  %739 = vmatmul.mubr.bf16.gmra.mrb[0].mxu0 %v589
  %v740 = vpop.f32.mrb[0].mxu0
  %v741 = vadd.f32 %v506, %v740
  %v742 = vpop.f32.mrb[0].mxu0
  %v743 = vpop.f32.mrb[0].mxu0
  %v744 = vadd.f32 %v508, %v743
  %v745 = vpop.f32.mrb[0].mxu0
  %746 = vmatprep.mubr.bf16.mxu0 0
  %747 = vmatmul.mubr.bf16.gmra.mrb[0].mxu0 %v592
  %v748 = vpop.f32.mrb[0].mxu0
  %v749 = vadd.f32 %v510, %v748
  %v750 = vpop.f32.mrb[0].mxu0
  %v751 = vpop.f32.mrb[0].mxu0
  %v752 = vadd.f32 %v512, %v751
  %v753 = vpop.f32.mrb[0].mxu0
  %754 = vdwg.mxu0
  %v755 = vlaneseq
  %v756 = vshrl.u32 %v755, 7
  %v757 = vsub.s32 1, %v756
  %v758 = vrot.slane %v125, %v757
  %v759 = vadd.f32 %v629, %v758
  %v760 = vadd.f32 %v632, %v758
  %v761 = vadd.f32 %v637, %v758
  %v762 = vadd.f32 %v640, %v758
  %v763 = vadd.f32 %v645, %v758
  %v764 = vadd.f32 %v648, %v758
  %v765 = vadd.f32 %v653, %v758
  %v766 = vadd.f32 %v656, %v758
  %v767 = vadd.f32 %v661, %v758
  %v768 = vadd.f32 %v664, %v758
  %v769 = vadd.f32 %v669, %v758
  %v770 = vadd.f32 %v672, %v758
  %v771 = vadd.f32 %v677, %v758
  %v772 = vadd.f32 %v680, %v758
  %v773 = vadd.f32 %v685, %v758
  %v774 = vadd.f32 %v688, %v758
  %v775 = vadd.f32 %v693, %v758
  %v776 = vadd.f32 %v696, %v758
  %v777 = vadd.f32 %v701, %v758
  %v778 = vadd.f32 %v704, %v758
  %v779 = vadd.f32 %v709, %v758
  %v780 = vadd.f32 %v712, %v758
  %v781 = vadd.f32 %v717, %v758
  %v782 = vadd.f32 %v720, %v758
  %v783 = vadd.f32 %v725, %v758
  %v784 = vadd.f32 %v728, %v758
  %v785 = vadd.f32 %v733, %v758
  %v786 = vadd.f32 %v736, %v758
  %v787 = vadd.f32 %v741, %v758
  %v788 = vadd.f32 %v744, %v758
  %v789 = vadd.f32 %v749, %v758
  %v790 = vadd.f32 %v752, %v758
  %v791 = vtanh.pop %v759
  %v792 = vtanh.pop %v760
  %v793 = vtanh.pop %v761
  %v794 = vtanh.pop %v762
  %v795 = vtanh.pop %v763
  %v796 = vtanh.pop %v764
  %v797 = vtanh.pop %v765
  %v798 = vtanh.pop %v766
  %v799 = vtanh.pop %v767
  %v800 = vtanh.pop %v768
  %v801 = vtanh.pop %v769
  %v802 = vtanh.pop %v770
  %v803 = vtanh.pop %v771
  %v804 = vtanh.pop %v772
  %v805 = vtanh.pop %v773
  %v806 = vtanh.pop %v774
  %v807 = vtanh.pop %v775
  %v808 = vtanh.pop %v776
  %v809 = vtanh.pop %v777
  %v810 = vtanh.pop %v778
  %v811 = vtanh.pop %v779
  %v812 = vtanh.pop %v780
  %v813 = vtanh.pop %v781
  %v814 = vtanh.pop %v782
  %v815 = vtanh.pop %v783
  %v816 = vtanh.pop %v784
  %v817 = vtanh.pop %v785
  %v818 = vtanh.pop %v786
  %v819 = vtanh.pop %v787
  %v820 = vtanh.pop %v788
  %v821 = vtanh.pop %v789
  %v822 = vtanh.pop %v790
  %v823 = vlaneseq
  %v824 = vshrl.u32 %v823, 7
  %v825 = vsub.s32 0, %v824
  %v826 = vrot.slane %v125, %v825
  %v827 = vmul.f32 %v791, %v826
  %v828 = vmul.f32 %v792, %v826
  %v829 = vmul.f32 %v793, %v826
  %v830 = vmul.f32 %v794, %v826
  %v831 = vmul.f32 %v795, %v826
  %v832 = vmul.f32 %v796, %v826
  %v833 = vmul.f32 %v797, %v826
  %v834 = vmul.f32 %v798, %v826
  %v835 = vmul.f32 %v799, %v826
  %v836 = vmul.f32 %v800, %v826
  %v837 = vmul.f32 %v801, %v826
  %v838 = vmul.f32 %v802, %v826
  %v839 = vmul.f32 %v803, %v826
  %v840 = vmul.f32 %v804, %v826
  %v841 = vmul.f32 %v805, %v826
  %v842 = vmul.f32 %v806, %v826
  %v843 = vmul.f32 %v807, %v826
  %v844 = vmul.f32 %v808, %v826
  %v845 = vmul.f32 %v809, %v826
  %v846 = vmul.f32 %v810, %v826
  %v847 = vmul.f32 %v811, %v826
  %v848 = vmul.f32 %v812, %v826
  %v849 = vmul.f32 %v813, %v826
  %v850 = vmul.f32 %v814, %v826
  %v851 = vmul.f32 %v815, %v826
  %v852 = vmul.f32 %v816, %v826
  %v853 = vmul.f32 %v817, %v826
  %v854 = vmul.f32 %v818, %v826
  %v855 = vmul.f32 %v819, %v826
  %v856 = vmul.f32 %v820, %v826
  %v857 = vmul.f32 %v821, %v826
  %v858 = vmul.f32 %v822, %v826
  %vm859 = vcmask 130048
  %v860 = vsel %vm859, %v827, 0.0
  %861 = vadd.xlane.f32.xlu0 %v860
  %v862 = vpop.xlane.xlu0 %861
  %v863 = vsel %vm859, %v828, 0.0
  %864 = vadd.xlane.f32.xlu0 %v863
  %v865 = vpop.xlane.xlu0 %864
  %v866 = vsel %vm859, %v829, 0.0
  %867 = vadd.xlane.f32.xlu0 %v866
  %v868 = vpop.xlane.xlu0 %867
  %v869 = vsel %vm859, %v830, 0.0
  %870 = vadd.xlane.f32.xlu0 %v869
  %v871 = vpop.xlane.xlu0 %870
  %v872 = vsel %vm859, %v831, 0.0
  %873 = vadd.xlane.f32.xlu0 %v872
  %v874 = vpop.xlane.xlu0 %873
  %v875 = vsel %vm859, %v832, 0.0
  %876 = vadd.xlane.f32.xlu0 %v875
  %v877 = vpop.xlane.xlu0 %876
  %v878 = vsel %vm859, %v833, 0.0
  %879 = vadd.xlane.f32.xlu0 %v878
  %v880 = vpop.xlane.xlu0 %879
  %v881 = vsel %vm859, %v834, 0.0
  %882 = vadd.xlane.f32.xlu0 %v881
  %v883 = vpop.xlane.xlu0 %882
  %v884 = vsel %vm859, %v835, 0.0
  %885 = vadd.xlane.f32.xlu0 %v884
  %v886 = vpop.xlane.xlu0 %885
  %v887 = vsel %vm859, %v836, 0.0
  %888 = vadd.xlane.f32.xlu0 %v887
  %v889 = vpop.xlane.xlu0 %888
  %v890 = vsel %vm859, %v837, 0.0
  %891 = vadd.xlane.f32.xlu0 %v890
  %v892 = vpop.xlane.xlu0 %891
  %v893 = vsel %vm859, %v838, 0.0
  %894 = vadd.xlane.f32.xlu0 %v893
  %v895 = vpop.xlane.xlu0 %894
  %v896 = vsel %vm859, %v839, 0.0
  %897 = vadd.xlane.f32.xlu0 %v896
  %v898 = vpop.xlane.xlu0 %897
  %v899 = vsel %vm859, %v840, 0.0
  %900 = vadd.xlane.f32.xlu0 %v899
  %v901 = vpop.xlane.xlu0 %900
  %v902 = vsel %vm859, %v841, 0.0
  %903 = vadd.xlane.f32.xlu0 %v902
  %v904 = vpop.xlane.xlu0 %903
  %v905 = vsel %vm859, %v842, 0.0
  %906 = vadd.xlane.f32.xlu0 %v905
  %v907 = vpop.xlane.xlu0 %906
  %v908 = vsel %vm859, %v843, 0.0
  %909 = vadd.xlane.f32.xlu0 %v908
  %v910 = vpop.xlane.xlu0 %909
  %v911 = vsel %vm859, %v844, 0.0
  %912 = vadd.xlane.f32.xlu0 %v911
  %v913 = vpop.xlane.xlu0 %912
  %v914 = vsel %vm859, %v845, 0.0
  %915 = vadd.xlane.f32.xlu0 %v914
  %v916 = vpop.xlane.xlu0 %915
  %v917 = vsel %vm859, %v846, 0.0
  %918 = vadd.xlane.f32.xlu0 %v917
  %v919 = vpop.xlane.xlu0 %918
  %v920 = vsel %vm859, %v847, 0.0
  %921 = vadd.xlane.f32.xlu0 %v920
  %v922 = vpop.xlane.xlu0 %921
  %v923 = vsel %vm859, %v848, 0.0
  %924 = vadd.xlane.f32.xlu0 %v923
  %v925 = vpop.xlane.xlu0 %924
  %v926 = vsel %vm859, %v849, 0.0
  %927 = vadd.xlane.f32.xlu0 %v926
  %v928 = vpop.xlane.xlu0 %927
  %v929 = vsel %vm859, %v850, 0.0
  %930 = vadd.xlane.f32.xlu0 %v929
  %v931 = vpop.xlane.xlu0 %930
  %v932 = vsel %vm859, %v851, 0.0
  %933 = vadd.xlane.f32.xlu0 %v932
  %v934 = vpop.xlane.xlu0 %933
  %v935 = vsel %vm859, %v852, 0.0
  %936 = vadd.xlane.f32.xlu0 %v935
  %v937 = vpop.xlane.xlu0 %936
  %v938 = vsel %vm859, %v853, 0.0
  %939 = vadd.xlane.f32.xlu0 %v938
  %v940 = vpop.xlane.xlu0 %939
  %v941 = vsel %vm859, %v854, 0.0
  %942 = vadd.xlane.f32.xlu0 %v941
  %v943 = vpop.xlane.xlu0 %942
  %v944 = vsel %vm859, %v855, 0.0
  %945 = vadd.xlane.f32.xlu0 %v944
  %v946 = vpop.xlane.xlu0 %945
  %v947 = vsel %vm859, %v856, 0.0
  %948 = vadd.xlane.f32.xlu0 %v947
  %v949 = vpop.xlane.xlu0 %948
  %v950 = vsel %vm859, %v857, 0.0
  %951 = vadd.xlane.f32.xlu0 %v950
  %v952 = vpop.xlane.xlu0 %951
  %v953 = vsel %vm859, %v858, 0.0
  %954 = vadd.xlane.f32.xlu0 %v953
  %v955 = vpop.xlane.xlu0 %954
  %v956 = vld [vmem:[#allocation2] sm:$0x1]
  %v958 = vlaneseq
  %v959 = vshrl.u32 %v958, 7
  %v960 = vsub.s32 0, %v959
  %v961 = vrot.slane %v956, %v960
  %v963 = vadd.f32 %v862, %v961
  %v964 = vadd.f32 %v865, %v961
  %v965 = vadd.f32 %v868, %v961
  %v966 = vadd.f32 %v871, %v961
  %v967 = vadd.f32 %v874, %v961
  %v968 = vadd.f32 %v877, %v961
  %v969 = vadd.f32 %v880, %v961
  %v970 = vadd.f32 %v883, %v961
  %v971 = vadd.f32 %v886, %v961
  %v972 = vadd.f32 %v889, %v961
  %v973 = vadd.f32 %v892, %v961
  %v974 = vadd.f32 %v895, %v961
  %v975 = vadd.f32 %v898, %v961
  %v976 = vadd.f32 %v901, %v961
  %v977 = vadd.f32 %v904, %v961
  %v978 = vadd.f32 %v907, %v961
  %v979 = vadd.f32 %v910, %v961
  %v980 = vadd.f32 %v913, %v961
  %v981 = vadd.f32 %v916, %v961
  %v982 = vadd.f32 %v919, %v961
  %v983 = vadd.f32 %v922, %v961
  %v984 = vadd.f32 %v925, %v961
  %v985 = vadd.f32 %v928, %v961
  %v986 = vadd.f32 %v931, %v961
  %v987 = vadd.f32 %v934, %v961
  %v988 = vadd.f32 %v937, %v961
  %v989 = vadd.f32 %v940, %v961
  %v990 = vadd.f32 %v943, %v961
  %v991 = vadd.f32 %v946, %v961
  %v992 = vadd.f32 %v949, %v961
  %v993 = vadd.f32 %v952, %v961
  %v994 = vadd.f32 %v955, %v961
  %v995 = vxor.u32 %v963, 2147483648
  %v996 = vxor.u32 %v964, 2147483648
  %v997 = vxor.u32 %v965, 2147483648
  %v998 = vxor.u32 %v966, 2147483648
  %v999 = vxor.u32 %v967, 2147483648
  %v1000 = vxor.u32 %v968, 2147483648
  %v1001 = vxor.u32 %v969, 2147483648
  %v1002 = vxor.u32 %v970, 2147483648
  %v1003 = vxor.u32 %v971, 2147483648
  %v1004 = vxor.u32 %v972, 2147483648
  %v1005 = vxor.u32 %v973, 2147483648
  %v1006 = vxor.u32 %v974, 2147483648
  %v1007 = vxor.u32 %v975, 2147483648
  %v1008 = vxor.u32 %v976, 2147483648
  %v1009 = vxor.u32 %v977, 2147483648
  %v1010 = vxor.u32 %v978, 2147483648
  %v1011 = vxor.u32 %v979, 2147483648
  %v1012 = vxor.u32 %v980, 2147483648
  %v1013 = vxor.u32 %v981, 2147483648
  %v1014 = vxor.u32 %v982, 2147483648
  %v1015 = vxor.u32 %v983, 2147483648
  %v1016 = vxor.u32 %v984, 2147483648
  %v1017 = vxor.u32 %v985, 2147483648
  %v1018 = vxor.u32 %v986, 2147483648
  %v1019 = vxor.u32 %v987, 2147483648
  %v1020 = vxor.u32 %v988, 2147483648
  %v1021 = vxor.u32 %v989, 2147483648
  %v1022 = vxor.u32 %v990, 2147483648
  %v1023 = vxor.u32 %v991, 2147483648
  %v1024 = vxor.u32 %v992, 2147483648
  %v1025 = vxor.u32 %v993, 2147483648
  %v1026 = vxor.u32 %v994, 2147483648
  %v1027 = vmul.f32 %v995, 1.442695
  %v1028 = vpow.pop %v1027
  %v1029 = vmul.f32 %v996, 1.442695
  %v1030 = vpow.pop %v1029
  %v1031 = vmul.f32 %v997, 1.442695
  %v1032 = vpow.pop %v1031
  %v1033 = vmul.f32 %v998, 1.442695
  %v1034 = vpow.pop %v1033
  %v1035 = vmul.f32 %v999, 1.442695
  %v1036 = vpow.pop %v1035
  %v1037 = vmul.f32 %v1000, 1.442695
  %v1038 = vpow.pop %v1037
  %v1039 = vmul.f32 %v1001, 1.442695
  %v1040 = vpow.pop %v1039
  %v1041 = vmul.f32 %v1002, 1.442695
  %v1042 = vpow.pop %v1041
  %v1043 = vmul.f32 %v1003, 1.442695
  %v1044 = vpow.pop %v1043
  %v1045 = vmul.f32 %v1004, 1.442695
  %v1046 = vpow.pop %v1045
  %v1047 = vmul.f32 %v1005, 1.442695
  %v1048 = vpow.pop %v1047
  %v1049 = vmul.f32 %v1006, 1.442695
  %v1050 = vpow.pop %v1049
  %v1051 = vmul.f32 %v1007, 1.442695
  %v1052 = vpow.pop %v1051
  %v1053 = vmul.f32 %v1008, 1.442695
  %v1054 = vpow.pop %v1053
  %v1055 = vmul.f32 %v1009, 1.442695
  %v1056 = vpow.pop %v1055
  %v1057 = vmul.f32 %v1010, 1.442695
  %v1058 = vpow.pop %v1057
  %v1059 = vmul.f32 %v1011, 1.442695
  %v1060 = vpow.pop %v1059
  %v1061 = vmul.f32 %v1012, 1.442695
  %v1062 = vpow.pop %v1061
  %v1063 = vmul.f32 %v1013, 1.442695
  %v1064 = vpow.pop %v1063
  %v1065 = vmul.f32 %v1014, 1.442695
  %v1066 = vpow.pop %v1065
  %v1067 = vmul.f32 %v1015, 1.442695
  %v1068 = vpow.pop %v1067
  %v1069 = vmul.f32 %v1016, 1.442695
  %v1070 = vpow.pop %v1069
  %v1071 = vmul.f32 %v1017, 1.442695
  %v1072 = vpow.pop %v1071
  %v1073 = vmul.f32 %v1018, 1.442695
  %v1074 = vpow.pop %v1073
  %v1075 = vmul.f32 %v1019, 1.442695
  %v1076 = vpow.pop %v1075
  %v1077 = vmul.f32 %v1020, 1.442695
  %v1078 = vpow.pop %v1077
  %v1079 = vmul.f32 %v1021, 1.442695
  %v1080 = vpow.pop %v1079
  %v1081 = vmul.f32 %v1022, 1.442695
  %v1082 = vpow.pop %v1081
  %v1083 = vmul.f32 %v1023, 1.442695
  %v1084 = vpow.pop %v1083
  %v1085 = vmul.f32 %v1024, 1.442695
  %v1086 = vpow.pop %v1085
  %v1087 = vmul.f32 %v1025, 1.442695
  %v1088 = vpow.pop %v1087
  %v1089 = vmul.f32 %v1026, 1.442695
  %v1090 = vpow.pop %v1089
  %v1091 = vadd.f32 %v1028, 1.0
  %v1092 = vadd.f32 %v1030, 1.0
  %v1093 = vadd.f32 %v1032, 1.0
  %v1094 = vadd.f32 %v1034, 1.0
  %v1095 = vadd.f32 %v1036, 1.0
  %v1096 = vadd.f32 %v1038, 1.0
  %v1097 = vadd.f32 %v1040, 1.0
  %v1098 = vadd.f32 %v1042, 1.0
  %v1099 = vadd.f32 %v1044, 1.0
  %v1100 = vadd.f32 %v1046, 1.0
  %v1101 = vadd.f32 %v1048, 1.0
  %v1102 = vadd.f32 %v1050, 1.0
  %v1103 = vadd.f32 %v1052, 1.0
  %v1104 = vadd.f32 %v1054, 1.0
  %v1105 = vadd.f32 %v1056, 1.0
  %v1106 = vadd.f32 %v1058, 1.0
  %v1107 = vadd.f32 %v1060, 1.0
  %v1108 = vadd.f32 %v1062, 1.0
  %v1109 = vadd.f32 %v1064, 1.0
  %v1110 = vadd.f32 %v1066, 1.0
  %v1111 = vadd.f32 %v1068, 1.0
  %v1112 = vadd.f32 %v1070, 1.0
  %v1113 = vadd.f32 %v1072, 1.0
  %v1114 = vadd.f32 %v1074, 1.0
  %v1115 = vadd.f32 %v1076, 1.0
  %v1116 = vadd.f32 %v1078, 1.0
  %v1117 = vadd.f32 %v1080, 1.0
  %v1118 = vadd.f32 %v1082, 1.0
  %v1119 = vadd.f32 %v1084, 1.0
  %v1120 = vadd.f32 %v1086, 1.0
  %v1121 = vadd.f32 %v1088, 1.0
  %v1122 = vadd.f32 %v1090, 1.0
  %v1123 = vrcp.pop %v1091
  %v1124 = vmul.f32 1.0, %v1123
  %v1125 = vrcp.pop %v1092
  %v1126 = vmul.f32 1.0, %v1125
  %v1127 = vrcp.pop %v1093
  %v1128 = vmul.f32 1.0, %v1127
  %v1129 = vrcp.pop %v1094
  %v1130 = vmul.f32 1.0, %v1129
  %v1131 = vrcp.pop %v1095
  %v1132 = vmul.f32 1.0, %v1131
  %v1133 = vrcp.pop %v1096
  %v1134 = vmul.f32 1.0, %v1133
  %v1135 = vrcp.pop %v1097
  %v1136 = vmul.f32 1.0, %v1135
  %v1137 = vrcp.pop %v1098
  %v1138 = vmul.f32 1.0, %v1137
  %v1139 = vrcp.pop %v1099
  %v1140 = vmul.f32 1.0, %v1139
  %v1141 = vrcp.pop %v1100
  %v1142 = vmul.f32 1.0, %v1141
  %v1143 = vrcp.pop %v1101
  %v1144 = vmul.f32 1.0, %v1143
  %v1145 = vrcp.pop %v1102
  %v1146 = vmul.f32 1.0, %v1145
  %v1147 = vrcp.pop %v1103
  %v1148 = vmul.f32 1.0, %v1147
  %v1149 = vrcp.pop %v1104
  %v1150 = vmul.f32 1.0, %v1149
  %v1151 = vrcp.pop %v1105
  %v1152 = vmul.f32 1.0, %v1151
  %v1153 = vrcp.pop %v1106
  %v1154 = vmul.f32 1.0, %v1153
  %v1155 = vrcp.pop %v1107
  %v1156 = vmul.f32 1.0, %v1155
  %v1157 = vrcp.pop %v1108
  %v1158 = vmul.f32 1.0, %v1157
  %v1159 = vrcp.pop %v1109
  %v1160 = vmul.f32 1.0, %v1159
  %v1161 = vrcp.pop %v1110
  %v1162 = vmul.f32 1.0, %v1161
  %v1163 = vrcp.pop %v1111
  %v1164 = vmul.f32 1.0, %v1163
  %v1165 = vrcp.pop %v1112
  %v1166 = vmul.f32 1.0, %v1165
  %v1167 = vrcp.pop %v1113
  %v1168 = vmul.f32 1.0, %v1167
  %v1169 = vrcp.pop %v1114
  %v1170 = vmul.f32 1.0, %v1169
  %v1171 = vrcp.pop %v1115
  %v1172 = vmul.f32 1.0, %v1171
  %v1173 = vrcp.pop %v1116
  %v1174 = vmul.f32 1.0, %v1173
  %v1175 = vrcp.pop %v1117
  %v1176 = vmul.f32 1.0, %v1175
  %v1177 = vrcp.pop %v1118
  %v1178 = vmul.f32 1.0, %v1177
  %v1179 = vrcp.pop %v1119
  %v1180 = vmul.f32 1.0, %v1179
  %v1181 = vrcp.pop %v1120
  %v1182 = vmul.f32 1.0, %v1181
  %v1183 = vrcp.pop %v1121
  %v1184 = vmul.f32 1.0, %v1183
  %v1185 = vrcp.pop %v1122
  %v1186 = vmul.f32 1.0, %v1185
  %v1187 = vlaneseq
  %v1188 = vshrl.u32 %v1187, 7
  %v1189 = vsub.s32 0, %v1188
  %v1190 = vrot.slane %v126, %v1189
  %v1191 = vmul.f32 %v259, %v1190
  %v1192 = vmul.f32 %v262, %v1190
  %v1193 = vmul.f32 %v267, %v1190
  %v1194 = vmul.f32 %v270, %v1190
  %v1195 = vmul.f32 %v275, %v1190
  %v1196 = vmul.f32 %v278, %v1190
  %v1197 = vmul.f32 %v283, %v1190
  %v1198 = vmul.f32 %v286, %v1190
  %v1199 = vmul.f32 %v291, %v1190
  %v1200 = vmul.f32 %v294, %v1190
  %v1201 = vmul.f32 %v299, %v1190
  %v1202 = vmul.f32 %v302, %v1190
  %v1203 = vmul.f32 %v307, %v1190
  %v1204 = vmul.f32 %v310, %v1190
  %v1205 = vmul.f32 %v315, %v1190
  %v1206 = vmul.f32 %v318, %v1190
  %v1207 = vmul.f32 %v323, %v1190
  %v1208 = vmul.f32 %v326, %v1190
  %v1209 = vmul.f32 %v331, %v1190
  %v1210 = vmul.f32 %v334, %v1190
  %v1211 = vmul.f32 %v339, %v1190
  %v1212 = vmul.f32 %v342, %v1190
  %v1213 = vmul.f32 %v347, %v1190
  %v1214 = vmul.f32 %v350, %v1190
  %v1215 = vmul.f32 %v355, %v1190
  %v1216 = vmul.f32 %v358, %v1190
  %v1217 = vmul.f32 %v363, %v1190
  %v1218 = vmul.f32 %v366, %v1190
  %v1219 = vmul.f32 %v371, %v1190
  %v1220 = vmul.f32 %v374, %v1190
  %v1221 = vmul.f32 %v379, %v1190
  %v1222 = vmul.f32 %v382, %v1190
  %v1223 = vlaneseq
  %v1224 = vshrl.u32 %v1223, 7
  %v1225 = vsub.s32 1, %v1224
  %v1226 = vrot.slane %v126, %v1225
  %v1227 = vadd.f32 %v1191, %v1226
  %v1228 = vadd.f32 %v1192, %v1226
  %v1229 = vadd.f32 %v1193, %v1226
  %v1230 = vadd.f32 %v1194, %v1226
  %v1231 = vadd.f32 %v1195, %v1226
  %v1232 = vadd.f32 %v1196, %v1226
  %v1233 = vadd.f32 %v1197, %v1226
  %v1234 = vadd.f32 %v1198, %v1226
  %v1235 = vadd.f32 %v1199, %v1226
  %v1236 = vadd.f32 %v1200, %v1226
  %v1237 = vadd.f32 %v1201, %v1226
  %v1238 = vadd.f32 %v1202, %v1226
  %v1239 = vadd.f32 %v1203, %v1226
  %v1240 = vadd.f32 %v1204, %v1226
  %v1241 = vadd.f32 %v1205, %v1226
  %v1242 = vadd.f32 %v1206, %v1226
  %v1243 = vadd.f32 %v1207, %v1226
  %v1244 = vadd.f32 %v1208, %v1226
  %v1245 = vadd.f32 %v1209, %v1226
  %v1246 = vadd.f32 %v1210, %v1226
  %v1247 = vadd.f32 %v1211, %v1226
  %v1248 = vadd.f32 %v1212, %v1226
  %v1249 = vadd.f32 %v1213, %v1226
  %v1250 = vadd.f32 %v1214, %v1226
  %v1251 = vadd.f32 %v1215, %v1226
  %v1252 = vadd.f32 %v1216, %v1226
  %v1253 = vadd.f32 %v1217, %v1226
  %v1254 = vadd.f32 %v1218, %v1226
  %v1255 = vadd.f32 %v1219, %v1226
  %v1256 = vadd.f32 %v1220, %v1226
  %v1257 = vadd.f32 %v1221, %v1226
  %v1258 = vadd.f32 %v1222, %v1226
  %v1259 = vmax.f32 %v1227, 0.0
  %v1260 = vmax.f32 %v1228, 0.0
  %v1261 = vmax.f32 %v1229, 0.0
  %v1262 = vmax.f32 %v1230, 0.0
  %v1263 = vmax.f32 %v1231, 0.0
  %v1264 = vmax.f32 %v1232, 0.0
  %v1265 = vmax.f32 %v1233, 0.0
  %v1266 = vmax.f32 %v1234, 0.0
  %v1267 = vmax.f32 %v1235, 0.0
  %v1268 = vmax.f32 %v1236, 0.0
  %v1269 = vmax.f32 %v1237, 0.0
  %v1270 = vmax.f32 %v1238, 0.0
  %v1271 = vmax.f32 %v1239, 0.0
  %v1272 = vmax.f32 %v1240, 0.0
  %v1273 = vmax.f32 %v1241, 0.0
  %v1274 = vmax.f32 %v1242, 0.0
  %v1275 = vmax.f32 %v1243, 0.0
  %v1276 = vmax.f32 %v1244, 0.0
  %v1277 = vmax.f32 %v1245, 0.0
  %v1278 = vmax.f32 %v1246, 0.0
  %v1279 = vmax.f32 %v1247, 0.0
  %v1280 = vmax.f32 %v1248, 0.0
  %v1281 = vmax.f32 %v1249, 0.0
  %v1282 = vmax.f32 %v1250, 0.0
  %v1283 = vmax.f32 %v1251, 0.0
  %v1284 = vmax.f32 %v1252, 0.0
  %v1285 = vmax.f32 %v1253, 0.0
  %v1286 = vmax.f32 %v1254, 0.0
  %v1287 = vmax.f32 %v1255, 0.0
  %v1288 = vmax.f32 %v1256, 0.0
  %v1289 = vmax.f32 %v1257, 0.0
  %v1290 = vmax.f32 %v1258, 0.0
  %1292 = vset.pattern.permute.xlu0 0
  %1293 = vperm.xlu0 %1292, %v1124
  %v1294 = vpop.permute.xlu0 %1293
  %1297 = vset.pattern.permute.xlu0 0
  %1298 = vperm.xlu0 %1297, %v1126
  %v1299 = vpop.permute.xlu0 %1298
  %1302 = vset.pattern.permute.xlu0 0
  %1303 = vperm.xlu0 %1302, %v1128
  %v1304 = vpop.permute.xlu0 %1303
  %1307 = vset.pattern.permute.xlu0 0
  %1308 = vperm.xlu0 %1307, %v1130
  %v1309 = vpop.permute.xlu0 %1308
  %1312 = vset.pattern.permute.xlu0 0
  %1313 = vperm.xlu0 %1312, %v1132
  %v1314 = vpop.permute.xlu0 %1313
  %1317 = vset.pattern.permute.xlu0 0
  %1318 = vperm.xlu0 %1317, %v1134
  %v1319 = vpop.permute.xlu0 %1318
  %1322 = vset.pattern.permute.xlu0 0
  %1323 = vperm.xlu0 %1322, %v1136
  %v1324 = vpop.permute.xlu0 %1323
  %1327 = vset.pattern.permute.xlu0 0
  %1328 = vperm.xlu0 %1327, %v1138
  %v1329 = vpop.permute.xlu0 %1328
  %1332 = vset.pattern.permute.xlu0 0
  %1333 = vperm.xlu0 %1332, %v1140
  %v1334 = vpop.permute.xlu0 %1333
  %1337 = vset.pattern.permute.xlu0 0
  %1338 = vperm.xlu0 %1337, %v1142
  %v1339 = vpop.permute.xlu0 %1338
  %1342 = vset.pattern.permute.xlu0 0
  %1343 = vperm.xlu0 %1342, %v1144
  %v1344 = vpop.permute.xlu0 %1343
  %1347 = vset.pattern.permute.xlu0 0
  %1348 = vperm.xlu0 %1347, %v1146
  %v1349 = vpop.permute.xlu0 %1348
  %1352 = vset.pattern.permute.xlu0 0
  %1353 = vperm.xlu0 %1352, %v1148
  %v1354 = vpop.permute.xlu0 %1353
  %1357 = vset.pattern.permute.xlu0 0
  %1358 = vperm.xlu0 %1357, %v1150
  %v1359 = vpop.permute.xlu0 %1358
  %1362 = vset.pattern.permute.xlu0 0
  %1363 = vperm.xlu0 %1362, %v1152
  %v1364 = vpop.permute.xlu0 %1363
  %1367 = vset.pattern.permute.xlu0 0
  %1368 = vperm.xlu0 %1367, %v1154
  %v1369 = vpop.permute.xlu0 %1368
  %1372 = vset.pattern.permute.xlu0 0
  %1373 = vperm.xlu0 %1372, %v1156
  %v1374 = vpop.permute.xlu0 %1373
  %1377 = vset.pattern.permute.xlu0 0
  %1378 = vperm.xlu0 %1377, %v1158
  %v1379 = vpop.permute.xlu0 %1378
  %1382 = vset.pattern.permute.xlu0 0
  %1383 = vperm.xlu0 %1382, %v1160
  %v1384 = vpop.permute.xlu0 %1383
  %1387 = vset.pattern.permute.xlu0 0
  %1388 = vperm.xlu0 %1387, %v1162
  %v1389 = vpop.permute.xlu0 %1388
  %1392 = vset.pattern.permute.xlu0 0
  %1393 = vperm.xlu0 %1392, %v1164
  %v1394 = vpop.permute.xlu0 %1393
  %1397 = vset.pattern.permute.xlu0 0
  %1398 = vperm.xlu0 %1397, %v1166
  %v1399 = vpop.permute.xlu0 %1398
  %1402 = vset.pattern.permute.xlu0 0
  %1403 = vperm.xlu0 %1402, %v1168
  %v1404 = vpop.permute.xlu0 %1403
  %1407 = vset.pattern.permute.xlu0 0
  %1408 = vperm.xlu0 %1407, %v1170
  %v1409 = vpop.permute.xlu0 %1408
  %1412 = vset.pattern.permute.xlu0 0
  %1413 = vperm.xlu0 %1412, %v1172
  %v1414 = vpop.permute.xlu0 %1413
  %1417 = vset.pattern.permute.xlu0 0
  %1418 = vperm.xlu0 %1417, %v1174
  %v1419 = vpop.permute.xlu0 %1418
  %1422 = vset.pattern.permute.xlu0 0
  %1423 = vperm.xlu0 %1422, %v1176
  %v1424 = vpop.permute.xlu0 %1423
  %1427 = vset.pattern.permute.xlu0 0
  %1428 = vperm.xlu0 %1427, %v1178
  %v1429 = vpop.permute.xlu0 %1428
  %1432 = vset.pattern.permute.xlu0 0
  %1433 = vperm.xlu0 %1432, %v1180
  %v1434 = vpop.permute.xlu0 %1433
  %1437 = vset.pattern.permute.xlu0 0
  %1438 = vperm.xlu0 %1437, %v1182
  %v1439 = vpop.permute.xlu0 %1438
  %1442 = vset.pattern.permute.xlu0 0
  %1443 = vperm.xlu0 %1442, %v1184
  %v1444 = vpop.permute.xlu0 %1443
  %1447 = vset.pattern.permute.xlu0 0
  %1448 = vperm.xlu0 %1447, %v1186
  %v1449 = vpop.permute.xlu0 %1448
  %v1451 = vmul.f32 %v1259, %v1294
  %v1452 = vmul.f32 %v1260, %v1299
  %v1453 = vmul.f32 %v1261, %v1304
  %v1454 = vmul.f32 %v1262, %v1309
  %v1455 = vmul.f32 %v1263, %v1314
  %v1456 = vmul.f32 %v1264, %v1319
  %v1457 = vmul.f32 %v1265, %v1324
  %v1458 = vmul.f32 %v1266, %v1329
  %v1459 = vmul.f32 %v1267, %v1334
  %v1460 = vmul.f32 %v1268, %v1339
  %v1461 = vmul.f32 %v1269, %v1344
  %v1462 = vmul.f32 %v1270, %v1349
  %v1463 = vmul.f32 %v1271, %v1354
  %v1464 = vmul.f32 %v1272, %v1359
  %v1465 = vmul.f32 %v1273, %v1364
  %v1466 = vmul.f32 %v1274, %v1369
  %v1467 = vmul.f32 %v1275, %v1374
  %v1468 = vmul.f32 %v1276, %v1379
  %v1469 = vmul.f32 %v1277, %v1384
  %v1470 = vmul.f32 %v1278, %v1389
  %v1471 = vmul.f32 %v1279, %v1394
  %v1472 = vmul.f32 %v1280, %v1399
  %v1473 = vmul.f32 %v1281, %v1404
  %v1474 = vmul.f32 %v1282, %v1409
  %v1475 = vmul.f32 %v1283, %v1414
  %v1476 = vmul.f32 %v1284, %v1419
  %v1477 = vmul.f32 %v1285, %v1424
  %v1478 = vmul.f32 %v1286, %v1429
  %v1479 = vmul.f32 %v1287, %v1434
  %v1480 = vmul.f32 %v1288, %v1439
  %v1481 = vmul.f32 %v1289, %v1444
  %v1482 = vmul.f32 %v1290, %v1449
  %1483 = vst.msk [vmem:[%s7] sm:$0xff] %vm545, %v1451
  %1484 = vst.msk [vmem:[%s7 + $0x8] sm:$0xff] %vm545, %v1452
  %1485 = vst.msk [vmem:[%s7 + $0x10] sm:$0xff] %vm545, %v1453
  %1486 = vst.msk [vmem:[%s7 + $0x18] sm:$0xff] %vm545, %v1454
  %1487 = vst.msk [vmem:[%s7 + $0x20] sm:$0xff] %vm545, %v1455
  %1488 = vst.msk [vmem:[%s7 + $0x28] sm:$0xff] %vm545, %v1456
  %1489 = vst.msk [vmem:[%s7 + $0x30] sm:$0xff] %vm545, %v1457
  %1490 = vst.msk [vmem:[%s7 + $0x38] sm:$0xff] %vm545, %v1458
  %1491 = vst.msk [vmem:[%s7 + $0x40] sm:$0xff] %vm545, %v1459
  %1492 = vst.msk [vmem:[%s7 + $0x48] sm:$0xff] %vm545, %v1460
  %1493 = vst.msk [vmem:[%s7 + $0x50] sm:$0xff] %vm545, %v1461
  %1494 = vst.msk [vmem:[%s7 + $0x58] sm:$0xff] %vm545, %v1462
  %1495 = vst.msk [vmem:[%s7 + $0x60] sm:$0xff] %vm545, %v1463
  %1496 = vst.msk [vmem:[%s7 + $0x68] sm:$0xff] %vm545, %v1464
  %1497 = vst.msk [vmem:[%s7 + $0x70] sm:$0xff] %vm545, %v1465
  %1498 = vst.msk [vmem:[%s7 + $0x78] sm:$0xff] %vm545, %v1466
  %1499 = vst.msk [vmem:[%s7 + $0x80] sm:$0xff] %vm545, %v1467
  %1500 = vst.msk [vmem:[%s7 + $0x88] sm:$0xff] %vm545, %v1468
  %1501 = vst.msk [vmem:[%s7 + $0x90] sm:$0xff] %vm545, %v1469
  %1502 = vst.msk [vmem:[%s7 + $0x98] sm:$0xff] %vm545, %v1470
  %1503 = vst.msk [vmem:[%s7 + $0xa0] sm:$0xff] %vm545, %v1471
  %1504 = vst.msk [vmem:[%s7 + $0xa8] sm:$0xff] %vm545, %v1472
  %1505 = vst.msk [vmem:[%s7 + $0xb0] sm:$0xff] %vm545, %v1473
  %1506 = vst.msk [vmem:[%s7 + $0xb8] sm:$0xff] %vm545, %v1474
  %1507 = vst.msk [vmem:[%s7 + $0xc0] sm:$0xff] %vm545, %v1475
  %1508 = vst.msk [vmem:[%s7 + $0xc8] sm:$0xff] %vm545, %v1476
  %1509 = vst.msk [vmem:[%s7 + $0xd0] sm:$0xff] %vm545, %v1477
  %1510 = vst.msk [vmem:[%s7 + $0xd8] sm:$0xff] %vm545, %v1478
  %1511 = vst.msk [vmem:[%s7 + $0xe0] sm:$0xff] %vm545, %v1479
  %1512 = vst.msk [vmem:[%s7 + $0xe8] sm:$0xff] %vm545, %v1480
  %1513 = vst.msk [vmem:[%s7 + $0xf0] sm:$0xff] %vm545, %v1481
  %1514 = vst.msk [vmem:[%s7 + $0xf8] sm:$0xff] %vm545, %v1482
  // Predicated region
  $region30: #{tpu_custom_call.1} parent=0 // pred_check
    _
  $region31: #{tpu_custom_call.1} parent=0 // pred_check_branch
    %1516 = sbr.rel (0) target = $region33
  $region32: #{tpu_custom_call.1} parent=0 // pred_region
    _
  $region33: #{tpu_custom_call.1} parent=0 // pred_fallthru
    _
  // Predicated region
  $region34: #{tpu_custom_call.1} parent=0 // pred_check
    _
  $region35: #{tpu_custom_call.1} parent=0 // pred_check_branch
    %1518 = sbr.rel (0) target = $region37
  $region36: #{tpu_custom_call.1} parent=0 // pred_region
    _
  $region37: #{tpu_custom_call.1} parent=0 // pred_fallthru
    _

</llo_original>
